<compile_context>
chip_gen: v7x
topology: tpu7x:2x2x1
jax: 0.10.0
libtpu: 0.0.40
codegen_flags: <defaults>
</compile_context>

<pallas_src>
import functools
import math

import jax
import jax.numpy as jnp
from jax.experimental import pallas as pl
from jax.experimental.pallas import tpu as pltpu

KS = 2          # Conv3d kernel_size
STRIDE = 2      # Conv3d stride
BN_EPS = 1e-5


def _conv_stats_kernel(p_ref, w_ref, b_ref, y_ref, sum_ref, ssq_ref,
                       *, tile_s, spatial_valid):
    """One (batch, spatial-tile) step: y = W @ patches + b, plus BN partial stats.

    p_ref   : (8*Cin, tile_s)  transposed im2col patches (spatial on lanes)
    w_ref   : (Cout, 8*Cin)    dense conv weight
    b_ref   : (Cout, 1)        conv bias
    y_ref   : (Cout, tile_s)   conv output (pre-BN), lane-dense
    sum_ref : (Cout, 1)        per-tile sum of y over valid columns
    ssq_ref : (Cout, 1)        per-tile sum of y^2 over valid columns
    """
    y = jnp.dot(w_ref[...], p_ref[...], preferred_element_type=jnp.float32)
    y = y + b_ref[...]
    y_ref[...] = y

    # Mask spatial columns that are only padding of the last tile (exact BN stats).
    col0 = pl.program_id(1) * tile_s
    cidx = col0 + jax.lax.broadcasted_iota(jnp.int32, (1, tile_s), 1)
    valid = (cidx < spatial_valid).astype(jnp.float32)        # (1, tile_s)
    yv = y * valid
    sum_ref[...] = jnp.sum(yv, axis=1, keepdims=True)
    ssq_ref[...] = jnp.sum(yv * yv, axis=1, keepdims=True)


def _bn_prelu_kernel(y_ref, scale_ref, shift_ref, alpha_ref, o_ref):
    """Lane-dense BN affine + PReLU: o = prelu(y * scale + shift).

    y_ref/o_ref : (Cout, tile_s)   lane-dense conv output / final output
    scale_ref   : (Cout, 1)        gamma * rsqrt(var + eps)
    shift_ref   : (Cout, 1)        beta - mean * scale
    alpha_ref   : (1, 1)           shared PReLU slope
    """
    z = y_ref[...] * scale_ref[...] + shift_ref[...]
    o_ref[...] = jnp.where(z > 0, z, alpha_ref[...] * z)


def downsampling_forward(x, params):
    """DownSampling forward.  x: (N, Cin, D, H, W) f32 -> (N, Cout, D//2, H//2, W//2)."""
    w = params["conv_w"]           # (Cout, Cin, 2, 2, 2)  PyTorch layout
    b = params["conv_b"]           # (Cout,)
    gamma = params["bn_gamma"]     # (Cout,)
    beta = params["bn_beta"]       # (Cout,)
    alpha = params["prelu_alpha"]  # (1, 1)

    N, Cin, D, H, W = x.shape
    Cout = w.shape[0]
    Do, Ho, Wo = D // STRIDE, H // STRIDE, W // STRIDE
    spatial = Do * Ho * Wo
    kdim = KS * KS * KS * Cin

    # ---- transposed im2col (pure layout transform; stride == kernel, no overlap) ----
    xt = x[:, :, :Do * KS, :Ho * KS, :Wo * KS]
    xt = xt.reshape(N, Cin, Do, KS, Ho, KS, Wo, KS)
    patches = jnp.transpose(xt, (0, 1, 3, 5, 7, 2, 4, 6))   # (N,Cin,kd,kh,kw,Do,Ho,Wo)
    patches = patches.reshape(N, kdim, spatial)

    # Conv weight -> (Cout, kdim); column order (Cin,kd,kh,kw) matches the patches.
    w_mat = w.reshape(Cout, kdim)
    b_col = b.reshape(Cout, 1)

    # ---- spatial tiling: lane dim is a multiple of 128, block stays a few MB ----
    tile_cap = ((spatial + 127) // 128) * 128
    tile_budget = max(128, ((2 * 1024 * 1024) // (4 * max(kdim, 1))) // 128 * 128)
    tile_s = min(tile_cap, tile_budget)
    grid_s = pl.cdiv(spatial, tile_s)
    spatial_pad = grid_s * tile_s
    if spatial_pad != spatial:
        patches = jnp.pad(patches, ((0, 0), (0, 0), (0, spatial_pad - spatial)))

    # ---- kernel 1: conv matmul + per-tile BN partial stats (fully parallel grid) ----
    kernel1 = functools.partial(_conv_stats_kernel, tile_s=tile_s,
                                spatial_valid=spatial)
    y_t, psum, pssq = pl.pallas_call(
        kernel1,
        out_shape=(
            jax.ShapeDtypeStruct((N, Cout, spatial_pad), jnp.float32),
            jax.ShapeDtypeStruct((N * grid_s, Cout, 1), jnp.float32),
            jax.ShapeDtypeStruct((N * grid_s, Cout, 1), jnp.float32),
        ),
        grid=(N, grid_s),
        in_specs=[
            pl.BlockSpec((None, kdim, tile_s), lambda n, s: (n, 0, s)),
            pl.BlockSpec((Cout, kdim), lambda n, s: (0, 0)),
            pl.BlockSpec((Cout, 1), lambda n, s: (0, 0)),
        ],
        out_specs=(
            pl.BlockSpec((None, Cout, tile_s), lambda n, s: (n, 0, s)),
            pl.BlockSpec((None, Cout, 1), lambda n, s, gs=grid_s: (n * gs + s, 0, 0)),
            pl.BlockSpec((None, Cout, 1), lambda n, s, gs=grid_s: (n * gs + s, 0, 0)),
        ),
        compiler_params=pltpu.CompilerParams(
            dimension_semantics=("parallel", "parallel")),
    )(patches, w_mat, b_col)

    # ---- BatchNorm statistics (training mode): tiny cross-tile combine in XLA ----
    # TODO(synk): running_mean/running_var buffer updates (a training-mode side
    # effect of nn.BatchNorm3d) are not materialized; forward output is unaffected.
    cnt = jnp.float32(N * spatial)
    s = jnp.sum(psum, axis=(0, 2))                       # (Cout,)
    sq = jnp.sum(pssq, axis=(0, 2))                      # (Cout,)
    mean = s / cnt
    var = jnp.maximum(sq / cnt - mean * mean, 0.0)       # biased variance
    inv = jax.lax.rsqrt(var + BN_EPS)
    scale = (gamma * inv).reshape(Cout, 1)
    shift = (beta - mean * gamma * inv).reshape(Cout, 1)

    # ---- kernel 2: lane-dense BN affine + PReLU ----
    out_t = pl.pallas_call(
        _bn_prelu_kernel,
        out_shape=jax.ShapeDtypeStruct((N, Cout, spatial_pad), jnp.float32),
        grid=(N, grid_s),
        in_specs=[
            pl.BlockSpec((None, Cout, tile_s), lambda n, s: (n, 0, s)),
            pl.BlockSpec((Cout, 1), lambda n, s: (0, 0)),
            pl.BlockSpec((Cout, 1), lambda n, s: (0, 0)),
            pl.BlockSpec((1, 1), lambda n, s: (0, 0)),
        ],
        out_specs=pl.BlockSpec((None, Cout, tile_s), lambda n, s: (n, 0, s)),
        compiler_params=pltpu.CompilerParams(
            dimension_semantics=("parallel", "parallel")),
    )(y_t, scale, shift, alpha)

    # ---- back to PyTorch NCDHW (pure reshape, no transpose needed) ----
    return out_t[:, :, :spatial].reshape(N, Cout, Do, Ho, Wo)


def init_params(key, in_channels, out_channels):
    """Deterministic synthetic parameters matching the nn.Module's shapes / inits."""
    k1, k2 = jax.random.split(key)
    fan_in = in_channels * KS * KS * KS
    bound = 1.0 / math.sqrt(fan_in)
    w = jax.random.uniform(k1, (out_channels, in_channels, KS, KS, KS),
                           jnp.float32, -bound, bound)      # Conv3d default-ish init
    b = jax.random.uniform(k2, (out_channels,), jnp.float32, -bound, bound)
    return {
        "conv_w": w,
        "conv_b": b,
        "bn_gamma": jnp.ones((out_channels,), jnp.float32),   # BatchNorm3d weight init
        "bn_beta": jnp.zeros((out_channels,), jnp.float32),   # BatchNorm3d bias init
        "prelu_alpha": jnp.full((1, 1), 0.25, jnp.float32),   # PReLU default init
    }


def _reference(x, params):
    """Pure-JAX reference of the module's training-mode forward."""
    y = jax.lax.conv_general_dilated(
        x, params["conv_w"], window_strides=(STRIDE,) * 3, padding="VALID",
        dimension_numbers=("NCDHW", "OIDHW", "NCDHW"),
        precision=jax.lax.Precision.HIGHEST)
    y = y + params["conv_b"].reshape(1, -1, 1, 1, 1)
    mean = jnp.mean(y, axis=(0, 2, 3, 4), keepdims=True)
    var = jnp.var(y, axis=(0, 2, 3, 4), keepdims=True)
    yn = (y - mean) * jax.lax.rsqrt(var + BN_EPS)
    yn = yn * params["bn_gamma"].reshape(1, -1, 1, 1, 1) \
         + params["bn_beta"].reshape(1, -1, 1, 1, 1)
    a = params["prelu_alpha"].reshape(())
    return jnp.where(yn > 0, yn, a * yn)


if __name__ == "__main__":
    # Small shapes consistent with the module: batch=2, in_channels=4 -> out 8, spatial 16^3.
    N, Cin, Cout, D, H, W = 2, 4, 8, 16, 16, 16

    key = jax.random.PRNGKey(0)
    kx, kp = jax.random.split(key)
    x = jax.random.normal(kx, (N, Cin, D, H, W), jnp.float32)   # PyTorch NCDHW
    params = init_params(kp, Cin, Cout)

    out = jax.block_until_ready(jax.jit(downsampling_forward)(x, params))
    assert out.shape == (N, Cout, D // STRIDE, H // STRIDE, W // STRIDE)

    ref = jax.block_until_ready(_reference(x, params))
    err = float(jnp.max(jnp.abs(out - ref)))
    assert err < 5e-3, f"max abs error vs reference: {err}"
    print("KERNEL_OK")
</pallas_src>

<mosaic_0001>
module attributes {stable_mosaic.version = 11 : i64} {
  func.func @_conv_stats_kernel(%arg0: i32, %arg1: i32, %arg2: memref<1x32x512xf32, #tpu.memory_space<vmem>>, %arg3: memref<8x32xf32, #tpu.memory_space<vmem>>, %arg4: memref<8x1xf32, #tpu.memory_space<vmem>>, %arg5: memref<1x8x512xf32, #tpu.memory_space<vmem>>, %arg6: memref<1x8x1xf32, #tpu.memory_space<vmem>>, %arg7: memref<1x8x1xf32, #tpu.memory_space<vmem>>) attributes {dimension_semantics = [#tpu.dimension_semantics<parallel>, #tpu.dimension_semantics<parallel>], iteration_bounds = array<i64: 2, 1>, scalar_prefetch = 0 : i64, scratch_operands = 0 : i64, tpu.core_type = #tpu.core_type<tc>, window_params = [{transform_indices = @transform_0, window_bounds = array<i64: 1, 32, 512>}, {pipeline_mode = #tpu.pipeline_mode<synchronous>, transform_indices = @transform_1, window_bounds = array<i64: 8, 32>}, {pipeline_mode = #tpu.pipeline_mode<synchronous>, transform_indices = @transform_2, window_bounds = array<i64: 8, 1>}, {transform_indices = @transform_3, window_bounds = array<i64: 1, 8, 512>}, {transform_indices = @transform_4, window_bounds = array<i64: 1, 8, 1>}, {transform_indices = @transform_5, window_bounds = array<i64: 1, 8, 1>}]} {
    %c0 = arith.constant 0 : index
    %c0_0 = arith.constant 0 : index
    %0 = vector.load %arg3[%c0, %c0_0] : memref<8x32xf32, #tpu.memory_space<vmem>>, vector<8x32xf32>
    %c0_1 = arith.constant 0 : index
    %c0_2 = arith.constant 0 : index
    %c0_3 = arith.constant 0 : index
    %1 = vector.load %arg2[%c0_1, %c0_2, %c0_3] : memref<1x32x512xf32, #tpu.memory_space<vmem>>, vector<1x32x512xf32>
    %2 = vector.shape_cast %1 : vector<1x32x512xf32> to vector<32x512xf32>
    %cst = arith.constant dense<0.000000e+00> : vector<8x512xf32>
    %3 = tpu.matmul %0, %2, %cst {dimension_numbers = #tpu.dot_dimension_numbers<[1], [0], [0], [1], [0, 0, 1, 1], [], []>} : vector<8x32xf32>, vector<32x512xf32>, vector<8x512xf32> -> vector<8x512xf32>
    %c0_4 = arith.constant 0 : index
    %c0_5 = arith.constant 0 : index
    %4 = vector.load %arg4[%c0_4, %c0_5] : memref<8x1xf32, #tpu.memory_space<vmem>>, vector<8x1xf32>
    %5 = vector.broadcast %4 : vector<8x1xf32> to vector<8x512xf32>
    %6 = arith.addf %3, %5 : vector<8x512xf32>
    %c0_6 = arith.constant 0 : index
    %c0_7 = arith.constant 0 : index
    %c0_8 = arith.constant 0 : index
    %7 = vector.load %arg5[%c0_6, %c0_7, %c0_8] : memref<1x8x512xf32, #tpu.memory_space<vmem>>, vector<1x8x512xf32>
    %8 = vector.shape_cast %7 : vector<1x8x512xf32> to vector<8x512xf32>
    %9 = vector.shape_cast %6 : vector<8x512xf32> to vector<1x8x512xf32>
    tpu.vector_store %arg5[%c0_6, %c0_7, %c0_8], %9 {strides = array<i32>} : memref<1x8x512xf32, #tpu.memory_space<vmem>>, vector<1x8x512xf32>,
    %c512_i32 = arith.constant 512 : i32
    %10 = arith.muli %arg1, %c512_i32 : i32
    %11 = tpu.iota {dimensions = array<i32: 1>} : vector<1x512xi32>
    %12 = vector.broadcast %10 : i32 to vector<1x512xi32>
    %13 = arith.addi %12, %11 : vector<1x512xi32>
    %c512_i32_9 = arith.constant 512 : i32
    %14 = vector.broadcast %c512_i32_9 : i32 to vector<1x512xi32>
    %15 = arith.cmpi slt, %13, %14 : vector<1x512xi32>
    %16 = arith.extui %15 : vector<1x512xi1> to vector<1x512xi32>
    %17 = arith.sitofp %16 : vector<1x512xi32> to vector<1x512xf32>
    %18 = vector.broadcast %17 : vector<1x512xf32> to vector<8x512xf32>
    %19 = arith.mulf %6, %18 : vector<8x512xf32>
    %cst_10 = arith.constant dense<0.000000e+00> : vector<8xf32>
    %20 = vector.multi_reduction <add>, %19, %cst_10 [1] : vector<8x512xf32> to vector<8xf32>
    %21 = vector.shape_cast %20 : vector<8xf32> to vector<8x1xf32>
    %c0_11 = arith.constant 0 : index
    %c0_12 = arith.constant 0 : index
    %c0_13 = arith.constant 0 : index
    %22 = vector.load %arg6[%c0_11, %c0_12, %c0_13] : memref<1x8x1xf32, #tpu.memory_space<vmem>>, vector<1x8x1xf32>
    %23 = vector.shape_cast %22 : vector<1x8x1xf32> to vector<8x1xf32>
    %24 = vector.shape_cast %21 : vector<8x1xf32> to vector<1x8x1xf32>
    tpu.vector_store %arg6[%c0_11, %c0_12, %c0_13], %24 {strides = array<i32>} : memref<1x8x1xf32, #tpu.memory_space<vmem>>, vector<1x8x1xf32>,
    %25 = arith.mulf %19, %19 : vector<8x512xf32>
    %cst_14 = arith.constant dense<0.000000e+00> : vector<8xf32>
    %26 = vector.multi_reduction <add>, %25, %cst_14 [1] : vector<8x512xf32> to vector<8xf32>
    %27 = vector.shape_cast %26 : vector<8xf32> to vector<8x1xf32>
    %c0_15 = arith.constant 0 : index
    %c0_16 = arith.constant 0 : index
    %c0_17 = arith.constant 0 : index
    %28 = vector.load %arg7[%c0_15, %c0_16, %c0_17] : memref<1x8x1xf32, #tpu.memory_space<vmem>>, vector<1x8x1xf32>
    %29 = vector.shape_cast %28 : vector<1x8x1xf32> to vector<8x1xf32>
    %30 = vector.shape_cast %27 : vector<8x1xf32> to vector<1x8x1xf32>
    tpu.vector_store %arg7[%c0_15, %c0_16, %c0_17], %30 {strides = array<i32>} : memref<1x8x1xf32, #tpu.memory_space<vmem>>, vector<1x8x1xf32>,
    return
  }
  func.func @transform_0(%arg0: i32, %arg1: i32) -> (i32, i32, i32) {
    %c0_i32 = arith.constant 0 : i32
    %c0_i32_0 = arith.constant 0 : i32
    return %arg0, %c0_i32, %arg1 : i32, i32, i32
  }
  func.func @transform_1(%arg0: i32, %arg1: i32) -> (i32, i32) {
    %c0_i32 = arith.constant 0 : i32
    %c0_i32_0 = arith.constant 0 : i32
    %c0_i32_1 = arith.constant 0 : i32
    return %c0_i32, %c0_i32_0 : i32, i32
  }
  func.func @transform_2(%arg0: i32, %arg1: i32) -> (i32, i32) {
    %c0_i32 = arith.constant 0 : i32
    %c0_i32_0 = arith.constant 0 : i32
    %c0_i32_1 = arith.constant 0 : i32
    return %c0_i32, %c0_i32_0 : i32, i32
  }
  func.func @transform_3(%arg0: i32, %arg1: i32) -> (i32, i32, i32) {
    %c0_i32 = arith.constant 0 : i32
    %c0_i32_0 = arith.constant 0 : i32
    return %arg0, %c0_i32, %arg1 : i32, i32, i32
  }
  func.func @transform_4(%arg0: i32, %arg1: i32) -> (i32, i32, i32) {
    %c1_i32 = arith.constant 1 : i32
    %0 = arith.muli %arg0, %c1_i32 : i32
    %1 = arith.addi %0, %arg1 : i32
    %c0_i32 = arith.constant 0 : i32
    %c0_i32_0 = arith.constant 0 : i32
    %c0_i32_1 = arith.constant 0 : i32
    return %1, %c0_i32, %c0_i32_0 : i32, i32, i32
  }
  func.func @transform_5(%arg0: i32, %arg1: i32) -> (i32, i32, i32) {
    %c1_i32 = arith.constant 1 : i32
    %0 = arith.muli %arg0, %c1_i32 : i32
    %1 = arith.addi %0, %arg1 : i32
    %c0_i32 = arith.constant 0 : i32
    %c0_i32_0 = arith.constant 0 : i32
    %c0_i32_1 = arith.constant 0 : i32
    return %1, %c0_i32, %c0_i32_0 : i32, i32, i32
  }
}

module attributes {stable_mosaic.version = 11 : i64} {
  func.func @_bn_prelu_kernel(%arg0: i32, %arg1: i32, %arg2: memref<1x8x512xf32, #tpu.memory_space<vmem>>, %arg3: memref<8x1xf32, #tpu.memory_space<vmem>>, %arg4: memref<8x1xf32, #tpu.memory_space<vmem>>, %arg5: memref<1x1xf32, #tpu.memory_space<vmem>>, %arg6: memref<1x8x512xf32, #tpu.memory_space<vmem>>) attributes {dimension_semantics = [#tpu.dimension_semantics<parallel>, #tpu.dimension_semantics<parallel>], iteration_bounds = array<i64: 2, 1>, scalar_prefetch = 0 : i64, scratch_operands = 0 : i64, tpu.core_type = #tpu.core_type<tc>, window_params = [{transform_indices = @transform_0, window_bounds = array<i64: 1, 8, 512>}, {pipeline_mode = #tpu.pipeline_mode<synchronous>, transform_indices = @transform_1, window_bounds = array<i64: 8, 1>}, {pipeline_mode = #tpu.pipeline_mode<synchronous>, transform_indices = @transform_2, window_bounds = array<i64: 8, 1>}, {pipeline_mode = #tpu.pipeline_mode<synchronous>, transform_indices = @transform_3, window_bounds = array<i64: 1, 1>}, {transform_indices = @transform_4, window_bounds = array<i64: 1, 8, 512>}]} {
    %c0 = arith.constant 0 : index
    %c0_0 = arith.constant 0 : index
    %c0_1 = arith.constant 0 : index
    %0 = vector.load %arg2[%c0, %c0_0, %c0_1] : memref<1x8x512xf32, #tpu.memory_space<vmem>>, vector<1x8x512xf32>
    %1 = vector.shape_cast %0 : vector<1x8x512xf32> to vector<8x512xf32>
    %c0_2 = arith.constant 0 : index
    %c0_3 = arith.constant 0 : index
    %2 = vector.load %arg3[%c0_2, %c0_3] : memref<8x1xf32, #tpu.memory_space<vmem>>, vector<8x1xf32>
    %3 = vector.broadcast %2 : vector<8x1xf32> to vector<8x512xf32>
    %4 = arith.mulf %1, %3 : vector<8x512xf32>
    %c0_4 = arith.constant 0 : index
    %c0_5 = arith.constant 0 : index
    %5 = vector.load %arg4[%c0_4, %c0_5] : memref<8x1xf32, #tpu.memory_space<vmem>>, vector<8x1xf32>
    %6 = vector.broadcast %5 : vector<8x1xf32> to vector<8x512xf32>
    %7 = arith.addf %4, %6 : vector<8x512xf32>
    %cst = arith.constant 0.000000e+00 : f32
    %8 = vector.broadcast %cst : f32 to vector<8x512xf32>
    %9 = arith.cmpf ogt, %7, %8 : vector<8x512xf32>
    %c0_6 = arith.constant 0 : index
    %c0_7 = arith.constant 0 : index
    %10 = vector.load %arg5[%c0_6, %c0_7] : memref<1x1xf32, #tpu.memory_space<vmem>>, vector<1x1xf32>
    %11 = vector.broadcast %10 : vector<1x1xf32> to vector<8x512xf32>
    %12 = arith.mulf %11, %7 : vector<8x512xf32>
    %13 = arith.select %9, %7, %12 : vector<8x512xi1>, vector<8x512xf32>
    %c0_8 = arith.constant 0 : index
    %c0_9 = arith.constant 0 : index
    %c0_10 = arith.constant 0 : index
    %14 = vector.load %arg6[%c0_8, %c0_9, %c0_10] : memref<1x8x512xf32, #tpu.memory_space<vmem>>, vector<1x8x512xf32>
    %15 = vector.shape_cast %14 : vector<1x8x512xf32> to vector<8x512xf32>
    %16 = vector.shape_cast %13 : vector<8x512xf32> to vector<1x8x512xf32>
    tpu.vector_store %arg6[%c0_8, %c0_9, %c0_10], %16 {strides = array<i32>} : memref<1x8x512xf32, #tpu.memory_space<vmem>>, vector<1x8x512xf32>,
    return
  }
  func.func @transform_0(%arg0: i32, %arg1: i32) -> (i32, i32, i32) {
    %c0_i32 = arith.constant 0 : i32
    %c0_i32_0 = arith.constant 0 : i32
    return %arg0, %c0_i32, %arg1 : i32, i32, i32
  }
  func.func @transform_1(%arg0: i32, %arg1: i32) -> (i32, i32) {
    %c0_i32 = arith.constant 0 : i32
    %c0_i32_0 = arith.constant 0 : i32
    %c0_i32_1 = arith.constant 0 : i32
    return %c0_i32, %c0_i32_0 : i32, i32
  }
  func.func @transform_2(%arg0: i32, %arg1: i32) -> (i32, i32) {
    %c0_i32 = arith.constant 0 : i32
    %c0_i32_0 = arith.constant 0 : i32
    %c0_i32_1 = arith.constant 0 : i32
    return %c0_i32, %c0_i32_0 : i32, i32
  }
  func.func @transform_3(%arg0: i32, %arg1: i32) -> (i32, i32) {
    %c0_i32 = arith.constant 0 : i32
    %c0_i32_0 = arith.constant 0 : i32
    %c0_i32_1 = arith.constant 0 : i32
    return %c0_i32, %c0_i32_0 : i32, i32
  }
  func.func @transform_4(%arg0: i32, %arg1: i32) -> (i32, i32, i32) {
    %c0_i32 = arith.constant 0 : i32
    %c0_i32_0 = arith.constant 0 : i32
    return %arg0, %c0_i32, %arg1 : i32, i32, i32
  }
}

</mosaic_0001>

<llo_original>
// kernel: downsampling_forward.2
$region0: #{downsampling_forward.2}
  #allocation0 [shape = 'u32[]', space=smem, size = 0x4, offset = 0x4, fixed_abs, tag = 'smem constant byte address 0x4 - core index']
  #allocation1 [shape = 'u32[144,128]{1,0:T(1,128)}', space=vmem, size = 0x12000, scoped, tag = 'internal scratch']
  %s0 = inlined_call_operand.vmem [shape: f32[2,32,512], index: 0, kind: input, shape index: {}]
  %s1 = inlined_call_operand.vmem [shape: f32[8,32], index: 1, kind: input, shape index: {}]
  %s2 = inlined_call_operand.vmem [shape: f32[8,1], index: 2, kind: input, shape index: {}]
  %s3 = inlined_call_operand.vmem [shape: f32[2,8,512], index: 3, kind: output, shape index: {0}]
  %s4 = inlined_call_operand.vmem [shape: f32[2,8,1], index: 4, kind: output, shape index: {1}]
  %s5 = inlined_call_operand.vmem [shape: f32[2,8,1], index: 5, kind: output, shape index: {2}]
  %6 = xla_tuple %s3, %s4, %s5
  %s7 = sld [smem:[#allocation0]]
  $region61: #{downsampling_forward.2} parent=0
    _
  %s9 = ssub.s32 1, %s7
  %s10 = scalar_select 0, %s9, %s7
  loop: start=0, step=1, limit=4
  $region2: #{downsampling_forward.2} parent=0 // loop_pre_header
    _
  $region3: #{downsampling_forward.2} parent=0 // loop_header
    %s12 = sphi 0, %s16
    %p13 = scmp.ge.s32.totalorder %s12, 4
    %s19 = sphi 0, %s31
    %s20 = sphi 0, %s27
    %s21 = sphi 0, %s19
    %s22 = sphi 0, %s20
    %s23 = sphi 0, %s21
    %s24 = sphi 0, %s22
    %s36 = sphi 0, %s38
    %s39 = sphi 0, %s36
    %s40 = sphi 0, %s39
    %s56 = sphi 0, %s40
    %s60 = sphi 0, %s60
    %s62 = sphi 0, %s60
    %s63 = sphi 0, %s62
    %s77 = sphi 0, %s63
    %s81 = sphi 0, %s81
    %s83 = sphi 0, %s81
    %s84 = sphi 0, %s83
    %s98 = sphi 0, %s84
    %s106 = sphi 0, %s108
    %s109 = sphi 0, %s106
    %s110 = sphi 0, %s109
    %s126 = sphi 0, %s110
    %s134 = sphi 0, %s136
    %s137 = sphi 0, %s134
    %s138 = sphi 0, %s137
    %s154 = sphi 0, %s138
    %s162 = sphi 0, %s164
    %s165 = sphi 0, %s162
    %s166 = sphi 0, %s165
    %s182 = sphi 0, %s166
  $region4: #{downsampling_forward.2} parent=0 // loop_header_branch
    %15 = sbr.rel (%p13) target = $region8
  $region5: #{downsampling_forward.2} parent=0 // loop_body
    %s17 = ssub.s32 %s12, 1
    %s18 = ssub.s32 %s12, 2
    %s25 = sadd.s32 1, %s20
    %p26 = scmp.ge.s32.totalorder %s25, 1
    %s27 = scalar_select %p26, 0, %s25
    %s28 = sadd.s32 1, %s19
    %s29 = scalar_select %p26, %s28, %s19
    %p30 = scmp.ge.s32.totalorder %s29, 2
    %s31 = scalar_select %p30, 0, %s29
    %s32 = ssub.s32 %s19, %s31
    %s33 = ssub.s32 %s20, %s27
    %s34 = sor.u32 %s32, %s33
    %p35 = scmp.eq.s32.totalorder %s34, 0
    %s37 = sadd.s32 %s36, 1
    %s38 = scalar_select %p35, %s36, %s37
    %p41 = pneg %p35
    %p42 = scmp.eq.s32.totalorder %s12, 1
    %p43 = por %p41, %p42
    %p44 = scmp.ne.s32.totalorder %s36, %s39
    %p45 = scmp.eq.s32.totalorder %s12, 0
    %p46 = por %p44, %p45
    %p47 = scmp.ne.s32.totalorder %s36, %s39
    %p48 = scmp.eq.s32.totalorder %s17, 1
    %p49 = por %p47, %p48
    %p50 = scmp.ne.s32.totalorder %s39, %s40
    %p51 = scmp.eq.s32.totalorder %s17, 0
    %p52 = por %p50, %p51
    %p53 = scmp.ne.s32.totalorder %s39, %s40
    %p54 = scmp.eq.s32.totalorder %s18, 1
    %p55 = por %p53, %p54
    %p57 = scmp.ne.s32.totalorder %s40, %s56
    %p58 = scmp.eq.s32.totalorder %s18, 0
    %p59 = por %p57, %p58
    %s61 = sadd.s32 %s60, 1
    %p64 = scmp.eq.s32.totalorder %s12, 1
    %p65 = scmp.ne.s32.totalorder %s60, %s62
    %p66 = scmp.eq.s32.totalorder %s12, 0
    %p67 = por %p65, %p66
    %p68 = scmp.ne.s32.totalorder %s60, %s62
    %p69 = scmp.eq.s32.totalorder %s17, 1
    %p70 = por %p68, %p69
    %p71 = scmp.ne.s32.totalorder %s62, %s63
    %p72 = scmp.eq.s32.totalorder %s17, 0
    %p73 = por %p71, %p72
    %p74 = scmp.ne.s32.totalorder %s62, %s63
    %p75 = scmp.eq.s32.totalorder %s18, 1
    %p76 = por %p74, %p75
    %p78 = scmp.ne.s32.totalorder %s63, %s77
    %p79 = scmp.eq.s32.totalorder %s18, 0
    %p80 = por %p78, %p79
    %s82 = sadd.s32 %s81, 1
    %p85 = scmp.eq.s32.totalorder %s12, 1
    %p86 = scmp.ne.s32.totalorder %s81, %s83
    %p87 = scmp.eq.s32.totalorder %s12, 0
    %p88 = por %p86, %p87
    %p89 = scmp.ne.s32.totalorder %s81, %s83
    %p90 = scmp.eq.s32.totalorder %s17, 1
    %p91 = por %p89, %p90
    %p92 = scmp.ne.s32.totalorder %s83, %s84
    %p93 = scmp.eq.s32.totalorder %s17, 0
    %p94 = por %p92, %p93
    %p95 = scmp.ne.s32.totalorder %s83, %s84
    %p96 = scmp.eq.s32.totalorder %s18, 1
    %p97 = por %p95, %p96
    %p99 = scmp.ne.s32.totalorder %s84, %s98
    %p100 = scmp.eq.s32.totalorder %s18, 0
    %p101 = por %p99, %p100
    %s102 = ssub.s32 %s19, %s31
    %s103 = ssub.s32 %s20, %s27
    %s104 = sor.u32 %s102, %s103
    %p105 = scmp.eq.s32.totalorder %s104, 0
    %s107 = sadd.s32 %s106, 1
    %s108 = scalar_select %p105, %s106, %s107
    %p111 = pneg %p105
    %p112 = scmp.eq.s32.totalorder %s12, 1
    %p113 = por %p111, %p112
    %p114 = scmp.ne.s32.totalorder %s106, %s109
    %p115 = scmp.eq.s32.totalorder %s12, 0
    %p116 = por %p114, %p115
    %p117 = scmp.ne.s32.totalorder %s106, %s109
    %p118 = scmp.eq.s32.totalorder %s17, 1
    %p119 = por %p117, %p118
    %p120 = scmp.ne.s32.totalorder %s109, %s110
    %p121 = scmp.eq.s32.totalorder %s17, 0
    %p122 = por %p120, %p121
    %p123 = scmp.ne.s32.totalorder %s109, %s110
    %p124 = scmp.eq.s32.totalorder %s18, 1
    %p125 = por %p123, %p124
    %p127 = scmp.ne.s32.totalorder %s110, %s126
    %p128 = scmp.eq.s32.totalorder %s18, 0
    %p129 = por %p127, %p128
    %s130 = sadd.s32 %s19, %s20
    %s131 = sadd.s32 %s31, %s27
    %s132 = ssub.s32 %s130, %s131
    %p133 = scmp.eq.s32.totalorder %s132, 0
    %s135 = sadd.s32 %s134, 1
    %s136 = scalar_select %p133, %s134, %s135
    %p139 = pneg %p133
    %p140 = scmp.eq.s32.totalorder %s12, 1
    %p141 = por %p139, %p140
    %p142 = scmp.ne.s32.totalorder %s134, %s137
    %p143 = scmp.eq.s32.totalorder %s12, 0
    %p144 = por %p142, %p143
    %p145 = scmp.ne.s32.totalorder %s134, %s137
    %p146 = scmp.eq.s32.totalorder %s17, 1
    %p147 = por %p145, %p146
    %p148 = scmp.ne.s32.totalorder %s137, %s138
    %p149 = scmp.eq.s32.totalorder %s17, 0
    %p150 = por %p148, %p149
    %p151 = scmp.ne.s32.totalorder %s137, %s138
    %p152 = scmp.eq.s32.totalorder %s18, 1
    %p153 = por %p151, %p152
    %p155 = scmp.ne.s32.totalorder %s138, %s154
    %p156 = scmp.eq.s32.totalorder %s18, 0
    %p157 = por %p155, %p156
    %s158 = sadd.s32 %s19, %s20
    %s159 = sadd.s32 %s31, %s27
    %s160 = ssub.s32 %s158, %s159
    %p161 = scmp.eq.s32.totalorder %s160, 0
    %s163 = sadd.s32 %s162, 1
    %s164 = scalar_select %p161, %s162, %s163
    %p167 = pneg %p161
    %p168 = scmp.eq.s32.totalorder %s12, 1
    %p169 = por %p167, %p168
    %p170 = scmp.ne.s32.totalorder %s162, %s165
    %p171 = scmp.eq.s32.totalorder %s12, 0
    %p172 = por %p170, %p171
    %p173 = scmp.ne.s32.totalorder %s162, %s165
    %p174 = scmp.eq.s32.totalorder %s17, 1
    %p175 = por %p173, %p174
    %p176 = scmp.ne.s32.totalorder %s165, %s166
    %p177 = scmp.eq.s32.totalorder %s17, 0
    %p178 = por %p176, %p177
    %p179 = scmp.ne.s32.totalorder %s165, %s166
    %p180 = scmp.eq.s32.totalorder %s18, 1
    %p181 = por %p179, %p180
    %p183 = scmp.ne.s32.totalorder %s166, %s182
    %p184 = scmp.eq.s32.totalorder %s18, 0
    %p185 = por %p183, %p184
    %p186 = scmp.le.s32.totalorder 1, %s12
    %p187 = scmp.lt.s32.totalorder %s12, 3
    %p188 = pnand %p186, %p187
    %p189 = pneg %p188
    // Predicated region
    $region9: #{downsampling_forward.2} parent=5 // pred_check
      _
    $region10: #{downsampling_forward.2} parent=5 // pred_check_branch
      %191 = sbr.rel (%p188) target = $region12
    $region11: #{downsampling_forward.2} parent=5 // pred_region
      %s192 = ssub.s32 %s12, 1
      // Predicated region
      $region13: #{downsampling_forward.2} parent=11 // pred_check
        %p193 = pneg %p73
      $region14: #{downsampling_forward.2} parent=11 // pred_check_branch
        %195 = sbr.rel (%p193) target = $region16
      $region15: #{downsampling_forward.2} parent=11 // pred_region
        _
      $region16: #{downsampling_forward.2} parent=11 // pred_fallthru
        _
      // Predicated region
      $region17: #{downsampling_forward.2} parent=11 // pred_check
        %p196 = pneg %p94
      $region18: #{downsampling_forward.2} parent=11 // pred_check_branch
        %198 = sbr.rel (%p196) target = $region20
      $region19: #{downsampling_forward.2} parent=11 // pred_region
        _
      $region20: #{downsampling_forward.2} parent=11 // pred_fallthru
        _
    $region12: #{downsampling_forward.2} parent=5 // pred_fallthru
      _
    %p199 = scmp.lt.s32.totalorder %s12, 2
    // Predicated region
    $region21: #{downsampling_forward.2} parent=5 // pred_check
      %p200 = pneg %p199
    $region22: #{downsampling_forward.2} parent=5 // pred_check_branch
      %202 = sbr.rel (%p200) target = $region24
    $region23: #{downsampling_forward.2} parent=5 // pred_region
      // Predicated region
      $region25: #{downsampling_forward.2} parent=23 // pred_check
        %p203 = pneg %p46
      $region26: #{downsampling_forward.2} parent=23 // pred_check_branch
        %205 = sbr.rel (%p203) target = $region28
      $region27: #{downsampling_forward.2} parent=23 // pred_region
        %s206 = smul.u32 4, %s20
        %p207 = scmp.lt.s32.totalorder %s19, 1
        %s208 = scalar_select %p207, %s19, 1
        %p209 = scmp.lt.s32.totalorder %s206, 3
        %s210 = scalar_select %p209, %s206, 3
        %s211 = smul.addr %s208, 16
        %s212 = sadd.s32 %s210, %s211
        %s213 = smul.addr %s212, 8
        %s214 = scalar_lea.vmem %s0, %s213
        %s215 = smul.u32 4, %s20
      $region28: #{downsampling_forward.2} parent=23 // pred_fallthru
        _
    $region24: #{downsampling_forward.2} parent=5 // pred_fallthru
      _
    %p216 = scmp.le.s32.totalorder 1, %s12
    %p217 = scmp.lt.s32.totalorder %s12, 3
    %p218 = pnand %p216, %p217
    %p219 = pneg %p218
    // Predicated region
    $region29: #{downsampling_forward.2} parent=5 // pred_check
      _
    $region30: #{downsampling_forward.2} parent=5 // pred_check_branch
      %221 = sbr.rel (%p218) target = $region32
    $region31: #{downsampling_forward.2} parent=5 // pred_region
      %s222 = ssub.s32 %s12, 1
      %s223 = smul.u32 4, %s22
      %p224 = scmp.lt.s32.totalorder %s21, 1
      %s225 = scalar_select %p224, %s21, 1
      %p226 = scmp.lt.s32.totalorder %s223, 3
      %s227 = scalar_select %p226, %s223, 3
      %s228 = smul.addr %s225, 16
      %s229 = sadd.s32 %s227, %s228
      %s230 = smul.addr %s229, 8
      %s231 = scalar_lea.vmem %s0, %s230
      %p232 = pneg %p52
      %p233 = pneg %p49
      %p234 = pneg %p73
      %p235 = pneg %p70
      %p236 = pneg %p94
      %p237 = pneg %p91
      %p238 = pneg %p122
      %p239 = pneg %p119
      %s240 = smul.u32 4, %s22
      %p241 = scmp.lt.s32.totalorder %s21, 1
      %s242 = scalar_select %p241, %s21, 1
      %p243 = scmp.lt.s32.totalorder %s240, 3
      %s244 = scalar_select %p243, %s240, 3
      %s245 = smul.addr %s242, 4
      %s246 = sadd.s32 %s244, %s245
      %s247 = smul.addr %s246, 8
      %s248 = scalar_lea.vmem %s3, %s247
      %p249 = pneg %p150
      %p250 = pneg %p147
      %s251 = sadd.s32 %s21, %s22
      %p252 = scmp.lt.s32.totalorder %s251, 1
      %s253 = scalar_select %p252, %s251, 1
      %s254 = smul.addr %s253, 8
      %s255 = scalar_lea.vmem %s4, %s254
      %p256 = pneg %p178
      %p257 = pneg %p175
      %s258 = sadd.s32 %s21, %s22
      %p259 = scmp.lt.s32.totalorder %s258, 1
      %s260 = scalar_select %p259, %s258, 1
      %s261 = smul.addr %s260, 8
      %s262 = scalar_lea.vmem %s5, %s261
      %s263 = smul.u32 4, %s22
      %p264 = scmp.lt.s32.totalorder %s21, 1
      %s265 = scalar_select %p264, %s21, 1
      %p266 = scmp.lt.s32.totalorder %s263, 3
      %s267 = scalar_select %p266, %s263, 3
      %s268 = smul.addr %s265, 16
      %s269 = sadd.s32 %s267, %s268
      %s270 = smul.addr %s269, 8
      %s271 = scalar_lea.vmem %s0, %s270
      %s272 = smul.u32 4, %s22
      %s273 = smul.u32 4, %s22
      %p274 = scmp.lt.s32.totalorder %s21, 1
      %s275 = scalar_select %p274, %s21, 1
      %p276 = scmp.lt.s32.totalorder %s273, 3
      %s277 = scalar_select %p276, %s273, 3
      %s278 = smul.addr %s275, 4
      %s279 = sadd.s32 %s277, %s278
      %s280 = smul.addr %s279, 8
      %s281 = scalar_lea.vmem %s3, %s280
      %s282 = smul.u32 4, %s22
      %s283 = sadd.s32 %s21, %s22
      %p284 = scmp.lt.s32.totalorder %s283, 1
      %s285 = scalar_select %p284, %s283, 1
      %s286 = smul.addr %s285, 8
      %s287 = scalar_lea.vmem %s4, %s286
      %s288 = sadd.s32 %s21, %s22
      %s289 = sadd.s32 %s21, %s22
      %p290 = scmp.lt.s32.totalorder %s289, 1
      %s291 = scalar_select %p290, %s289, 1
      %s292 = smul.addr %s291, 8
      %s293 = scalar_lea.vmem %s5, %s292
      %s294 = sadd.s32 %s21, %s22
      %v295 = vld [vmem:[%s1] sm:$0xff]
      %v296 = vld [vmem:[%s271] sm:$0xff]
      %v297 = vld [vmem:[%s271 + $0x8] sm:$0xff]
      %v298 = vld [vmem:[%s271 + $0x10] sm:$0xff]
      %v299 = vld [vmem:[%s271 + $0x18] sm:$0xff]
      %v300 = vld [vmem:[%s271 + $0x20] sm:$0xff]
      %v301 = vld [vmem:[%s271 + $0x28] sm:$0xff]
      %v302 = vld [vmem:[%s271 + $0x30] sm:$0xff]
      %v303 = vld [vmem:[%s271 + $0x38] sm:$0xff]
      %v304 = vld [vmem:[%s271 + $0x40] sm:$0xff]
      %v305 = vld [vmem:[%s271 + $0x48] sm:$0xff]
      %v306 = vld [vmem:[%s271 + $0x50] sm:$0xff]
      %v307 = vld [vmem:[%s271 + $0x58] sm:$0xff]
      %v308 = vld [vmem:[%s271 + $0x60] sm:$0xff]
      %v309 = vld [vmem:[%s271 + $0x68] sm:$0xff]
      %v310 = vld [vmem:[%s271 + $0x70] sm:$0xff]
      %v311 = vld [vmem:[%s271 + $0x78] sm:$0xff]
      %v312 = vld [vmem:[%s2] sm:$0xff]
      %314 = vset.pattern.permute.xlu0 0
      %315 = vperm.xlu0 %314, %v312
      %v316 = vpop.permute.xlu0 %315
      %vm318 = vcmask 261120
      %v320 = vsel %vm318, %v295, 0
      %322 = vmatprep.subr.mxu0 %v297
      %323 = vmatpush1.msra.mxu0 %v296
      %324 = vmatprep.subr.mxu0 %v301
      %325 = vmatpush1.msra.mxu0 %v300
      %326 = vmatprep.subr.mxu0 %v305
      %327 = vmatpush1.msra.mxu0 %v304
      %328 = vmatprep.subr.mxu0 %v309
      %329 = vmatpush1.msra.mxu0 %v308
      %330 = vmatprep.subr.mxu0 0.0
      %331 = vmatpush1.msra.mxu0 0.0
      %332 = vmatprep.subr.mxu0 0.0
      %333 = vmatpush1.msra.mxu0 0.0
      %334 = vmatprep.subr.mxu0 0.0
      %335 = vmatpush1.msra.mxu0 0.0
      %336 = vmatprep.subr.mxu0 0.0
      %337 = vmatpush1.msra.mxu0 0.0
      %338 = vmatprep.subr.mxu0 0.0
      %339 = vmatpush1.msra.mxu0 0.0
      %340 = vmatprep.subr.mxu0 0.0
      %341 = vmatpush1.msra.mxu0 0.0
      %342 = vmatprep.subr.mxu0 0.0
      %343 = vmatpush1.msra.mxu0 0.0
      %344 = vmatprep.subr.mxu0 0.0
      %345 = vmatpush1.msra.mxu0 0.0
      %346 = vmatprep.subr.mxu0 0.0
      %347 = vmatpush1.msra.mxu0 0.0
      %348 = vmatprep.subr.mxu0 0.0
      %349 = vmatpush1.msra.mxu0 0.0
      %350 = vmatprep.subr.mxu0 0.0
      %351 = vmatpush1.msra.mxu0 0.0
      %352 = vmatprep.subr.mxu0 0.0
      %353 = vmatpush1.msra.mxu0 0.0
      %354 = vmatprep.subr.mxu0 0.0
      %355 = vmatpush1.msra.mxu0 0.0
      %356 = vmatprep.subr.mxu0 0.0
      %357 = vmatpush1.msra.mxu0 0.0
      %358 = vmatprep.subr.mxu0 0.0
      %359 = vmatpush1.msra.mxu0 0.0
      %360 = vmatprep.subr.mxu0 0.0
      %361 = vmatpush1.msra.mxu0 0.0
      %362 = vmatprep.subr.mxu0 0.0
      %363 = vmatpush1.msra.mxu0 0.0
      %364 = vmatprep.subr.mxu0 0.0
      %365 = vmatpush1.msra.mxu0 0.0
      %366 = vmatprep.subr.mxu0 0.0
      %367 = vmatpush1.msra.mxu0 0.0
      %368 = vmatprep.subr.mxu0 0.0
      %369 = vmatpush1.msra.mxu0 0.0
      %370 = vmatprep.subr.mxu0 0.0
      %371 = vmatpush1.msra.mxu0 0.0
      %372 = vmatprep.subr.mxu0 0.0
      %373 = vmatpush1.msra.mxu0 0.0
      %374 = vmatprep.subr.mxu0 0.0
      %375 = vmatpush1.msra.mxu0 0.0
      %376 = vmatprep.subr.mxu0 0.0
      %377 = vmatpush1.msra.mxu0 0.0
      %378 = vmatprep.subr.mxu0 0.0
      %379 = vmatpush1.msra.mxu0 0.0
      %380 = vmatprep.subr.mxu0 0.0
      %381 = vmatpush1.msra.mxu0 0.0
      %382 = vmatprep.subr.mxu0 0.0
      %383 = vmatpush1.msra.mxu0 0.0
      %384 = vmatprep.subr.mxu0 0.0
      %385 = vmatpush1.msra.mxu0 0.0
      %386 = vmatprep.mubr.f32.mxu0 0.0
      %387 = vmatmul.mubr.f32.gmra.mrb[0].mxu0 %v320
      %v388 = vpop.f32.mrb[0].mxu0
      %v389 = vadd.f32 %v316, %v388
      %v390 = vpop.f32.mrb[0].mxu0
      %v391 = vadd.f32 %v316, %v390
      %392 = vdwg.mxu0
      %393 = vmatprep.subr.mxu0 %v299
      %394 = vmatpush1.msra.mxu0 %v298
      %395 = vmatprep.subr.mxu0 %v303
      %396 = vmatpush1.msra.mxu0 %v302
      %397 = vmatprep.subr.mxu0 %v307
      %398 = vmatpush1.msra.mxu0 %v306
      %399 = vmatprep.subr.mxu0 %v311
      %400 = vmatpush1.msra.mxu0 %v310
      %401 = vmatprep.subr.mxu0 0.0
      %402 = vmatpush1.msra.mxu0 0.0
      %403 = vmatprep.subr.mxu0 0.0
      %404 = vmatpush1.msra.mxu0 0.0
      %405 = vmatprep.subr.mxu0 0.0
      %406 = vmatpush1.msra.mxu0 0.0
      %407 = vmatprep.subr.mxu0 0.0
      %408 = vmatpush1.msra.mxu0 0.0
      %409 = vmatprep.subr.mxu0 0.0
      %410 = vmatpush1.msra.mxu0 0.0
      %411 = vmatprep.subr.mxu0 0.0
      %412 = vmatpush1.msra.mxu0 0.0
      %413 = vmatprep.subr.mxu0 0.0
      %414 = vmatpush1.msra.mxu0 0.0
      %415 = vmatprep.subr.mxu0 0.0
      %416 = vmatpush1.msra.mxu0 0.0
      %417 = vmatprep.subr.mxu0 0.0
      %418 = vmatpush1.msra.mxu0 0.0
      %419 = vmatprep.subr.mxu0 0.0
      %420 = vmatpush1.msra.mxu0 0.0
      %421 = vmatprep.subr.mxu0 0.0
      %422 = vmatpush1.msra.mxu0 0.0
      %423 = vmatprep.subr.mxu0 0.0
      %424 = vmatpush1.msra.mxu0 0.0
      %425 = vmatprep.subr.mxu0 0.0
      %426 = vmatpush1.msra.mxu0 0.0
      %427 = vmatprep.subr.mxu0 0.0
      %428 = vmatpush1.msra.mxu0 0.0
      %429 = vmatprep.subr.mxu0 0.0
      %430 = vmatpush1.msra.mxu0 0.0
      %431 = vmatprep.subr.mxu0 0.0
      %432 = vmatpush1.msra.mxu0 0.0
      %433 = vmatprep.subr.mxu0 0.0
      %434 = vmatpush1.msra.mxu0 0.0
      %435 = vmatprep.subr.mxu0 0.0
      %436 = vmatpush1.msra.mxu0 0.0
      %437 = vmatprep.subr.mxu0 0.0
      %438 = vmatpush1.msra.mxu0 0.0
      %439 = vmatprep.subr.mxu0 0.0
      %440 = vmatpush1.msra.mxu0 0.0
      %441 = vmatprep.subr.mxu0 0.0
      %442 = vmatpush1.msra.mxu0 0.0
      %443 = vmatprep.subr.mxu0 0.0
      %444 = vmatpush1.msra.mxu0 0.0
      %445 = vmatprep.subr.mxu0 0.0
      %446 = vmatpush1.msra.mxu0 0.0
      %447 = vmatprep.subr.mxu0 0.0
      %448 = vmatpush1.msra.mxu0 0.0
      %449 = vmatprep.subr.mxu0 0.0
      %450 = vmatpush1.msra.mxu0 0.0
      %451 = vmatprep.subr.mxu0 0.0
      %452 = vmatpush1.msra.mxu0 0.0
      %453 = vmatprep.subr.mxu0 0.0
      %454 = vmatpush1.msra.mxu0 0.0
      %455 = vmatprep.subr.mxu0 0.0
      %456 = vmatpush1.msra.mxu0 0.0
      %457 = vmatprep.mubr.f32.mxu0 0.0
      %458 = vmatmul.mubr.f32.gmra.mrb[0].mxu0 %v320
      %v459 = vpop.f32.mrb[0].mxu0
      %v460 = vadd.f32 %v316, %v459
      %v461 = vpop.f32.mrb[0].mxu0
      %v462 = vadd.f32 %v316, %v461
      %463 = vdwg.mxu0
      %464 = vst [vmem:[%s281] sm:$0xff] %v389
      %465 = vst [vmem:[%s281 + $0x8] sm:$0xff] %v391
      %466 = vst [vmem:[%s281 + $0x10] sm:$0xff] %v460
      %467 = vst [vmem:[%s281 + $0x18] sm:$0xff] %v462
      %s468 = smul.u32 %s22, 512
      %v469 = vlaneseq
      %v470 = vand.u32 %v469, 127
      %v471 = vadd.s32 %v470, 128
      %v472 = vadd.s32 %v470, 256
      %v473 = vadd.s32 %v470, 384
      %v474 = vstv %s468
      %v475 = vadd.s32 %v474, %v470
      %v476 = vadd.s32 %v474, %v471
      %v477 = vadd.s32 %v474, %v472
      %v478 = vadd.s32 %v474, %v473
      %vm479 = vcmp.lt.s32.totalorder %v475, 512
      %vm480 = vcmp.lt.s32.totalorder %v476, 512
      %vm481 = vcmp.lt.s32.totalorder %v477, 512
      %vm482 = vcmp.lt.s32.totalorder %v478, 512
      %v483 = vsel %vm479, 1, 0
      %v484 = vsel %vm480, 1, 0
      %v485 = vsel %vm481, 1, 0
      %v486 = vsel %vm482, 1, 0
      %v487 = vcvt.s32.f32 %v483
      %v488 = vcvt.s32.f32 %v484
      %v489 = vcvt.s32.f32 %v485
      %v490 = vcvt.s32.f32 %v486
      %v491 = vmul.f32 %v389, %v487
      %v492 = vmul.f32 %v391, %v488
      %v493 = vmul.f32 %v460, %v489
      %v494 = vmul.f32 %v462, %v490
      %v495 = vadd.f32 %v491, %v492
      %v496 = vadd.f32 %v495, %v493
      %v497 = vadd.f32 %v496, %v494
      %498 = vadd.xlane.f32.xlu0 %v497
      %v499 = vpop.xlane.xlu0 %498
      %vm500 = vcmask 7168
      %501 = vst.msk [vmem:[%s287] sm:$0xff] %vm500, %v499
      %v502 = vmul.f32 %v491, %v491
      %v503 = vmul.f32 %v492, %v492
      %v504 = vmul.f32 %v493, %v493
      %v505 = vmul.f32 %v494, %v494
      %v506 = vadd.f32 %v502, %v503
      %v507 = vadd.f32 %v506, %v504
      %v508 = vadd.f32 %v507, %v505
      %509 = vadd.xlane.f32.xlu0 %v508
      %v510 = vpop.xlane.xlu0 %509
      %511 = vst.msk [vmem:[%s293] sm:$0xff] %vm500, %v510
      %s512 = smul.u32 4, %s22
      %p513 = scmp.lt.s32.totalorder %s21, 1
      %s514 = scalar_select %p513, %s21, 1
      %p515 = scmp.lt.s32.totalorder %s512, 3
      %s516 = scalar_select %p515, %s512, 3
      %s517 = smul.addr %s514, 4
      %s518 = sadd.s32 %s516, %s517
      %s519 = smul.addr %s518, 8
      %s520 = scalar_lea.vmem %s3, %s519
      %s521 = sadd.s32 %s21, %s22
      %p522 = scmp.lt.s32.totalorder %s521, 1
      %s523 = scalar_select %p522, %s521, 1
      %s524 = smul.addr %s523, 8
      %s525 = scalar_lea.vmem %s4, %s524
      %s526 = sadd.s32 %s21, %s22
      %p527 = scmp.lt.s32.totalorder %s526, 1
      %s528 = scalar_select %p527, %s526, 1
      %s529 = smul.addr %s528, 8
      %s530 = scalar_lea.vmem %s5, %s529
      // Predicated region
      $region33: #{downsampling_forward.2} parent=31 // pred_check
        %p531 = pneg %p119
      $region34: #{downsampling_forward.2} parent=31 // pred_check_branch
        %533 = sbr.rel (%p531) target = $region36
      $region35: #{downsampling_forward.2} parent=31 // pred_region
        %s534 = smul.u32 4, %s22
      $region36: #{downsampling_forward.2} parent=31 // pred_fallthru
        _
      // Predicated region
      $region37: #{downsampling_forward.2} parent=31 // pred_check
        %p535 = pneg %p147
      $region38: #{downsampling_forward.2} parent=31 // pred_check_branch
        %537 = sbr.rel (%p535) target = $region40
      $region39: #{downsampling_forward.2} parent=31 // pred_region
        %s538 = sadd.s32 %s21, %s22
      $region40: #{downsampling_forward.2} parent=31 // pred_fallthru
        _
      // Predicated region
      $region41: #{downsampling_forward.2} parent=31 // pred_check
        %p539 = pneg %p175
      $region42: #{downsampling_forward.2} parent=31 // pred_check_branch
        %541 = sbr.rel (%p539) target = $region44
      $region43: #{downsampling_forward.2} parent=31 // pred_region
        %s542 = sadd.s32 %s21, %s22
      $region44: #{downsampling_forward.2} parent=31 // pred_fallthru
        _
    $region32: #{downsampling_forward.2} parent=5 // pred_fallthru
      _
    %p543 = scmp.le.s32.totalorder 2, %s12
    // Predicated region
    $region45: #{downsampling_forward.2} parent=5 // pred_check
      %p544 = pneg %p543
    $region46: #{downsampling_forward.2} parent=5 // pred_check_branch
      %546 = sbr.rel (%p544) target = $region48
    $region47: #{downsampling_forward.2} parent=5 // pred_region
      %s547 = ssub.s32 %s12, 2
      // Predicated region
      $region49: #{downsampling_forward.2} parent=47 // pred_check
        %p548 = pneg %p125
      $region50: #{downsampling_forward.2} parent=47 // pred_check_branch
        %550 = sbr.rel (%p548) target = $region52
      $region51: #{downsampling_forward.2} parent=47 // pred_region
        %s551 = smul.u32 4, %s24
        %p552 = scmp.lt.s32.totalorder %s23, 1
        %s553 = scalar_select %p552, %s23, 1
        %p554 = scmp.lt.s32.totalorder %s551, 3
        %s555 = scalar_select %p554, %s551, 3
        %s556 = smul.addr %s553, 4
        %s557 = sadd.s32 %s555, %s556
        %s558 = smul.addr %s557, 8
        %s559 = scalar_lea.vmem %s3, %s558
      $region52: #{downsampling_forward.2} parent=47 // pred_fallthru
        _
      // Predicated region
      $region53: #{downsampling_forward.2} parent=47 // pred_check
        %p560 = pneg %p153
      $region54: #{downsampling_forward.2} parent=47 // pred_check_branch
        %562 = sbr.rel (%p560) target = $region56
      $region55: #{downsampling_forward.2} parent=47 // pred_region
        %s563 = sadd.s32 %s23, %s24
        %p564 = scmp.lt.s32.totalorder %s563, 1
        %s565 = scalar_select %p564, %s563, 1
        %s566 = smul.addr %s565, 8
        %s567 = scalar_lea.vmem %s4, %s566
      $region56: #{downsampling_forward.2} parent=47 // pred_fallthru
        _
      // Predicated region
      $region57: #{downsampling_forward.2} parent=47 // pred_check
        %p568 = pneg %p181
      $region58: #{downsampling_forward.2} parent=47 // pred_check_branch
        %570 = sbr.rel (%p568) target = $region60
      $region59: #{downsampling_forward.2} parent=47 // pred_region
        %s571 = sadd.s32 %s23, %s24
        %p572 = scmp.lt.s32.totalorder %s571, 1
        %s573 = scalar_select %p572, %s571, 1
        %s574 = smul.addr %s573, 8
        %s575 = scalar_lea.vmem %s5, %s574
      $region60: #{downsampling_forward.2} parent=47 // pred_fallthru
        _
    $region48: #{downsampling_forward.2} parent=5 // pred_fallthru
      _
  $region6: #{downsampling_forward.2} parent=0 // loop_footer
    %s16 = sadd.s32 1, %s12
  $region7: #{downsampling_forward.2} parent=0 // loop_footer_branch
    %11 = sbr.rel target = $region3
  $region8: #{downsampling_forward.2} parent=0 // loop_exit
    _

// kernel: downsampling_forward.3
$region0: #{downsampling_forward.3}
  #allocation0 [shape = 'u32[]', space=smem, size = 0x4, offset = 0x4, fixed_abs, tag = 'smem constant byte address 0x4 - core index']
  #allocation1 [shape = 'u32[144,128]{1,0:T(1,128)}', space=vmem, size = 0x12000, scoped, tag = 'internal scratch']
  #allocation2 [shape = 'f32[1,1]{1,0:T(1,128)S(1)}', space=vmem, size = 0x200, scoped, tag = 'scoped memory for downsampling_forward.3']
  %s0 = inlined_call_operand.vmem [shape: f32[2,8,512], index: 0, kind: input, shape index: {}]
  %s1 = inlined_call_operand.vmem [shape: f32[8,1], index: 1, kind: input, shape index: {}]
  %s2 = inlined_call_operand.vmem [shape: f32[8,1], index: 2, kind: input, shape index: {}]
  %s3 = inlined_call_operand.<no memory space> [shape: f32[1,1], index: 3, kind: input, shape index: {}]
  %s4 = inlined_call_operand.vmem [shape: f32[2,8,512], index: 4, kind: output, shape index: {}]
  %s5 = sld [smem:[#allocation0]]
  $region49: #{downsampling_forward.3} parent=0
    _
  %s7 = ssub.s32 1, %s5
  %s8 = scalar_select 0, %s7, %s5
  %v9 = vstv %s3
  %10 = vst [vmem:[#allocation2] sm:$0x1] %v9
  loop: start=0, step=1, limit=4
  $region2: #{downsampling_forward.3} parent=0 // loop_pre_header
    _
  $region3: #{downsampling_forward.3} parent=0 // loop_header
    %s12 = sphi 0, %s16
    %p13 = scmp.ge.s32.totalorder %s12, 4
    %s19 = sphi 0, %s31
    %s20 = sphi 0, %s27
    %s21 = sphi 0, %s19
    %s22 = sphi 0, %s20
    %s23 = sphi 0, %s21
    %s24 = sphi 0, %s22
    %s36 = sphi 0, %s38
    %s39 = sphi 0, %s36
    %s40 = sphi 0, %s39
    %s56 = sphi 0, %s40
    %s60 = sphi 0, %s60
    %s62 = sphi 0, %s60
    %s63 = sphi 0, %s62
    %s77 = sphi 0, %s63
    %s81 = sphi 0, %s81
    %s83 = sphi 0, %s81
    %s84 = sphi 0, %s83
    %s98 = sphi 0, %s84
    %s102 = sphi 0, %s102
    %s104 = sphi 0, %s102
    %s105 = sphi 0, %s104
    %s119 = sphi 0, %s105
    %s127 = sphi 0, %s129
    %s130 = sphi 0, %s127
    %s131 = sphi 0, %s130
    %s147 = sphi 0, %s131
  $region4: #{downsampling_forward.3} parent=0 // loop_header_branch
    %15 = sbr.rel (%p13) target = $region8
  $region5: #{downsampling_forward.3} parent=0 // loop_body
    %s17 = ssub.s32 %s12, 1
    %s18 = ssub.s32 %s12, 2
    %s25 = sadd.s32 1, %s20
    %p26 = scmp.ge.s32.totalorder %s25, 1
    %s27 = scalar_select %p26, 0, %s25
    %s28 = sadd.s32 1, %s19
    %s29 = scalar_select %p26, %s28, %s19
    %p30 = scmp.ge.s32.totalorder %s29, 2
    %s31 = scalar_select %p30, 0, %s29
    %s32 = ssub.s32 %s19, %s31
    %s33 = ssub.s32 %s20, %s27
    %s34 = sor.u32 %s32, %s33
    %p35 = scmp.eq.s32.totalorder %s34, 0
    %s37 = sadd.s32 %s36, 1
    %s38 = scalar_select %p35, %s36, %s37
    %p41 = pneg %p35
    %p42 = scmp.eq.s32.totalorder %s12, 1
    %p43 = por %p41, %p42
    %p44 = scmp.ne.s32.totalorder %s36, %s39
    %p45 = scmp.eq.s32.totalorder %s12, 0
    %p46 = por %p44, %p45
    %p47 = scmp.ne.s32.totalorder %s36, %s39
    %p48 = scmp.eq.s32.totalorder %s17, 1
    %p49 = por %p47, %p48
    %p50 = scmp.ne.s32.totalorder %s39, %s40
    %p51 = scmp.eq.s32.totalorder %s17, 0
    %p52 = por %p50, %p51
    %p53 = scmp.ne.s32.totalorder %s39, %s40
    %p54 = scmp.eq.s32.totalorder %s18, 1
    %p55 = por %p53, %p54
    %p57 = scmp.ne.s32.totalorder %s40, %s56
    %p58 = scmp.eq.s32.totalorder %s18, 0
    %p59 = por %p57, %p58
    %s61 = sadd.s32 %s60, 1
    %p64 = scmp.eq.s32.totalorder %s12, 1
    %p65 = scmp.ne.s32.totalorder %s60, %s62
    %p66 = scmp.eq.s32.totalorder %s12, 0
    %p67 = por %p65, %p66
    %p68 = scmp.ne.s32.totalorder %s60, %s62
    %p69 = scmp.eq.s32.totalorder %s17, 1
    %p70 = por %p68, %p69
    %p71 = scmp.ne.s32.totalorder %s62, %s63
    %p72 = scmp.eq.s32.totalorder %s17, 0
    %p73 = por %p71, %p72
    %p74 = scmp.ne.s32.totalorder %s62, %s63
    %p75 = scmp.eq.s32.totalorder %s18, 1
    %p76 = por %p74, %p75
    %p78 = scmp.ne.s32.totalorder %s63, %s77
    %p79 = scmp.eq.s32.totalorder %s18, 0
    %p80 = por %p78, %p79
    %s82 = sadd.s32 %s81, 1
    %p85 = scmp.eq.s32.totalorder %s12, 1
    %p86 = scmp.ne.s32.totalorder %s81, %s83
    %p87 = scmp.eq.s32.totalorder %s12, 0
    %p88 = por %p86, %p87
    %p89 = scmp.ne.s32.totalorder %s81, %s83
    %p90 = scmp.eq.s32.totalorder %s17, 1
    %p91 = por %p89, %p90
    %p92 = scmp.ne.s32.totalorder %s83, %s84
    %p93 = scmp.eq.s32.totalorder %s17, 0
    %p94 = por %p92, %p93
    %p95 = scmp.ne.s32.totalorder %s83, %s84
    %p96 = scmp.eq.s32.totalorder %s18, 1
    %p97 = por %p95, %p96
    %p99 = scmp.ne.s32.totalorder %s84, %s98
    %p100 = scmp.eq.s32.totalorder %s18, 0
    %p101 = por %p99, %p100
    %s103 = sadd.s32 %s102, 1
    %p106 = scmp.eq.s32.totalorder %s12, 1
    %p107 = scmp.ne.s32.totalorder %s102, %s104
    %p108 = scmp.eq.s32.totalorder %s12, 0
    %p109 = por %p107, %p108
    %p110 = scmp.ne.s32.totalorder %s102, %s104
    %p111 = scmp.eq.s32.totalorder %s17, 1
    %p112 = por %p110, %p111
    %p113 = scmp.ne.s32.totalorder %s104, %s105
    %p114 = scmp.eq.s32.totalorder %s17, 0
    %p115 = por %p113, %p114
    %p116 = scmp.ne.s32.totalorder %s104, %s105
    %p117 = scmp.eq.s32.totalorder %s18, 1
    %p118 = por %p116, %p117
    %p120 = scmp.ne.s32.totalorder %s105, %s119
    %p121 = scmp.eq.s32.totalorder %s18, 0
    %p122 = por %p120, %p121
    %s123 = ssub.s32 %s19, %s31
    %s124 = ssub.s32 %s20, %s27
    %s125 = sor.u32 %s123, %s124
    %p126 = scmp.eq.s32.totalorder %s125, 0
    %s128 = sadd.s32 %s127, 1
    %s129 = scalar_select %p126, %s127, %s128
    %p132 = pneg %p126
    %p133 = scmp.eq.s32.totalorder %s12, 1
    %p134 = por %p132, %p133
    %p135 = scmp.ne.s32.totalorder %s127, %s130
    %p136 = scmp.eq.s32.totalorder %s12, 0
    %p137 = por %p135, %p136
    %p138 = scmp.ne.s32.totalorder %s127, %s130
    %p139 = scmp.eq.s32.totalorder %s17, 1
    %p140 = por %p138, %p139
    %p141 = scmp.ne.s32.totalorder %s130, %s131
    %p142 = scmp.eq.s32.totalorder %s17, 0
    %p143 = por %p141, %p142
    %p144 = scmp.ne.s32.totalorder %s130, %s131
    %p145 = scmp.eq.s32.totalorder %s18, 1
    %p146 = por %p144, %p145
    %p148 = scmp.ne.s32.totalorder %s131, %s147
    %p149 = scmp.eq.s32.totalorder %s18, 0
    %p150 = por %p148, %p149
    %p151 = scmp.le.s32.totalorder 1, %s12
    %p152 = scmp.lt.s32.totalorder %s12, 3
    %p153 = pnand %p151, %p152
    %p154 = pneg %p153
    // Predicated region
    $region9: #{downsampling_forward.3} parent=5 // pred_check
      _
    $region10: #{downsampling_forward.3} parent=5 // pred_check_branch
      %156 = sbr.rel (%p153) target = $region12
    $region11: #{downsampling_forward.3} parent=5 // pred_region
      %s157 = ssub.s32 %s12, 1
      // Predicated region
      $region13: #{downsampling_forward.3} parent=11 // pred_check
        %p158 = pneg %p73
      $region14: #{downsampling_forward.3} parent=11 // pred_check_branch
        %160 = sbr.rel (%p158) target = $region16
      $region15: #{downsampling_forward.3} parent=11 // pred_region
        _
      $region16: #{downsampling_forward.3} parent=11 // pred_fallthru
        _
      // Predicated region
      $region17: #{downsampling_forward.3} parent=11 // pred_check
        %p161 = pneg %p94
      $region18: #{downsampling_forward.3} parent=11 // pred_check_branch
        %163 = sbr.rel (%p161) target = $region20
      $region19: #{downsampling_forward.3} parent=11 // pred_region
        _
      $region20: #{downsampling_forward.3} parent=11 // pred_fallthru
        _
      // Predicated region
      $region21: #{downsampling_forward.3} parent=11 // pred_check
        %p164 = pneg %p115
      $region22: #{downsampling_forward.3} parent=11 // pred_check_branch
        %166 = sbr.rel (%p164) target = $region24
      $region23: #{downsampling_forward.3} parent=11 // pred_region
        _
      $region24: #{downsampling_forward.3} parent=11 // pred_fallthru
        _
    $region12: #{downsampling_forward.3} parent=5 // pred_fallthru
      _
    %p167 = scmp.lt.s32.totalorder %s12, 2
    // Predicated region
    $region25: #{downsampling_forward.3} parent=5 // pred_check
      %p168 = pneg %p167
    $region26: #{downsampling_forward.3} parent=5 // pred_check_branch
      %170 = sbr.rel (%p168) target = $region28
    $region27: #{downsampling_forward.3} parent=5 // pred_region
      // Predicated region
      $region29: #{downsampling_forward.3} parent=27 // pred_check
        %p171 = pneg %p46
      $region30: #{downsampling_forward.3} parent=27 // pred_check_branch
        %173 = sbr.rel (%p171) target = $region32
      $region31: #{downsampling_forward.3} parent=27 // pred_region
        %s174 = smul.u32 4, %s20
        %p175 = scmp.lt.s32.totalorder %s19, 1
        %s176 = scalar_select %p175, %s19, 1
        %p177 = scmp.lt.s32.totalorder %s174, 3
        %s178 = scalar_select %p177, %s174, 3
        %s179 = smul.addr %s176, 4
        %s180 = sadd.s32 %s178, %s179
        %s181 = smul.addr %s180, 8
        %s182 = scalar_lea.vmem %s0, %s181
        %s183 = smul.u32 4, %s20
      $region32: #{downsampling_forward.3} parent=27 // pred_fallthru
        _
    $region28: #{downsampling_forward.3} parent=5 // pred_fallthru
      _
    %p184 = scmp.le.s32.totalorder 1, %s12
    %p185 = scmp.lt.s32.totalorder %s12, 3
    %p186 = pnand %p184, %p185
    %p187 = pneg %p186
    // Predicated region
    $region33: #{downsampling_forward.3} parent=5 // pred_check
      _
    $region34: #{downsampling_forward.3} parent=5 // pred_check_branch
      %189 = sbr.rel (%p186) target = $region36
    $region35: #{downsampling_forward.3} parent=5 // pred_region
      %s190 = ssub.s32 %s12, 1
      %s191 = smul.u32 4, %s22
      %p192 = scmp.lt.s32.totalorder %s21, 1
      %s193 = scalar_select %p192, %s21, 1
      %p194 = scmp.lt.s32.totalorder %s191, 3
      %s195 = scalar_select %p194, %s191, 3
      %s196 = smul.addr %s193, 4
      %s197 = sadd.s32 %s195, %s196
      %s198 = smul.addr %s197, 8
      %s199 = scalar_lea.vmem %s0, %s198
      %p200 = pneg %p52
      %p201 = pneg %p49
      %p202 = pneg %p73
      %p203 = pneg %p70
      %p204 = pneg %p94
      %p205 = pneg %p91
      %p206 = pneg %p115
      %p207 = pneg %p112
      %p208 = pneg %p143
      %p209 = pneg %p140
      %s210 = smul.u32 4, %s22
      %p211 = scmp.lt.s32.totalorder %s21, 1
      %s212 = scalar_select %p211, %s21, 1
      %p213 = scmp.lt.s32.totalorder %s210, 3
      %s214 = scalar_select %p213, %s210, 3
      %s215 = smul.addr %s212, 4
      %s216 = sadd.s32 %s214, %s215
      %s217 = smul.addr %s216, 8
      %s218 = scalar_lea.vmem %s4, %s217
      %s219 = smul.u32 4, %s22
      %p220 = scmp.lt.s32.totalorder %s21, 1
      %s221 = scalar_select %p220, %s21, 1
      %p222 = scmp.lt.s32.totalorder %s219, 3
      %s223 = scalar_select %p222, %s219, 3
      %s224 = smul.addr %s221, 4
      %s225 = sadd.s32 %s223, %s224
      %s226 = smul.addr %s225, 8
      %s227 = scalar_lea.vmem %s0, %s226
      %s228 = smul.u32 4, %s22
      %s229 = smul.u32 4, %s22
      %p230 = scmp.lt.s32.totalorder %s21, 1
      %s231 = scalar_select %p230, %s21, 1
      %p232 = scmp.lt.s32.totalorder %s229, 3
      %s233 = scalar_select %p232, %s229, 3
      %s234 = smul.addr %s231, 4
      %s235 = sadd.s32 %s233, %s234
      %s236 = smul.addr %s235, 8
      %s237 = scalar_lea.vmem %s4, %s236
      %s238 = smul.u32 4, %s22
      %v239 = vld [vmem:[%s227] sm:$0xff]
      %v240 = vld [vmem:[%s227 + $0x8] sm:$0xff]
      %v241 = vld [vmem:[%s227 + $0x10] sm:$0xff]
      %v242 = vld [vmem:[%s227 + $0x18] sm:$0xff]
      %v243 = vld [vmem:[%s1] sm:$0xff]
      %245 = vset.pattern.permute.xlu0 0
      %246 = vperm.xlu0 %245, %v243
      %v247 = vpop.permute.xlu0 %246
      %v249 = vmul.f32 %v239, %v247
      %v250 = vmul.f32 %v240, %v247
      %v251 = vmul.f32 %v241, %v247
      %v252 = vmul.f32 %v242, %v247
      %v253 = vld [vmem:[%s2] sm:$0xff]
      %255 = vset.pattern.permute.xlu0 0
      %256 = vperm.xlu0 %255, %v253
      %v257 = vpop.permute.xlu0 %256
      %v259 = vadd.f32 %v249, %v257
      %v260 = vadd.f32 %v250, %v257
      %v261 = vadd.f32 %v251, %v257
      %v262 = vadd.f32 %v252, %v257
      %vm263 = vcmp.gt.f32.partialorder %v259, 0.0
      %vm264 = vcmp.gt.f32.partialorder %v260, 0.0
      %vm265 = vcmp.gt.f32.partialorder %v261, 0.0
      %vm266 = vcmp.gt.f32.partialorder %v262, 0.0
      %v267 = vld [vmem:[#allocation2] sm:$0x1]
      %v269 = vlaneseq
      %v270 = vshrl.u32 %v269, 7
      %v271 = vsub.s32 0, %v270
      %v272 = vrot.slane %v267, %v271
      %273 = vset.pattern.permute.xlu0 0
      %274 = vperm.xlu0 %273, %v272
      %v275 = vpop.permute.xlu0 %274
      %v277 = vmul.f32 %v275, %v259
      %v278 = vmul.f32 %v275, %v260
      %v279 = vmul.f32 %v275, %v261
      %v280 = vmul.f32 %v275, %v262
      %v281 = vsel %vm263, %v259, %v277
      %v282 = vsel %vm264, %v260, %v278
      %v283 = vsel %vm265, %v261, %v279
      %v284 = vsel %vm266, %v262, %v280
      %285 = vst [vmem:[%s237] sm:$0xff] %v281
      %286 = vst [vmem:[%s237 + $0x8] sm:$0xff] %v282
      %287 = vst [vmem:[%s237 + $0x10] sm:$0xff] %v283
      %288 = vst [vmem:[%s237 + $0x18] sm:$0xff] %v284
      %s289 = smul.u32 4, %s22
      %p290 = scmp.lt.s32.totalorder %s21, 1
      %s291 = scalar_select %p290, %s21, 1
      %p292 = scmp.lt.s32.totalorder %s289, 3
      %s293 = scalar_select %p292, %s289, 3
      %s294 = smul.addr %s291, 4
      %s295 = sadd.s32 %s293, %s294
      %s296 = smul.addr %s295, 8
      %s297 = scalar_lea.vmem %s4, %s296
      // Predicated region
      $region37: #{downsampling_forward.3} parent=35 // pred_check
        %p298 = pneg %p140
      $region38: #{downsampling_forward.3} parent=35 // pred_check_branch
        %300 = sbr.rel (%p298) target = $region40
      $region39: #{downsampling_forward.3} parent=35 // pred_region
        %s301 = smul.u32 4, %s22
      $region40: #{downsampling_forward.3} parent=35 // pred_fallthru
        _
    $region36: #{downsampling_forward.3} parent=5 // pred_fallthru
      _
    %p302 = scmp.le.s32.totalorder 2, %s12
    // Predicated region
    $region41: #{downsampling_forward.3} parent=5 // pred_check
      %p303 = pneg %p302
    $region42: #{downsampling_forward.3} parent=5 // pred_check_branch
      %305 = sbr.rel (%p303) target = $region44
    $region43: #{downsampling_forward.3} parent=5 // pred_region
      %s306 = ssub.s32 %s12, 2
      // Predicated region
      $region45: #{downsampling_forward.3} parent=43 // pred_check
        %p307 = pneg %p146
      $region46: #{downsampling_forward.3} parent=43 // pred_check_branch
        %309 = sbr.rel (%p307) target = $region48
      $region47: #{downsampling_forward.3} parent=43 // pred_region
        %s310 = smul.u32 4, %s24
        %p311 = scmp.lt.s32.totalorder %s23, 1
        %s312 = scalar_select %p311, %s23, 1
        %p313 = scmp.lt.s32.totalorder %s310, 3
        %s314 = scalar_select %p313, %s310, 3
        %s315 = smul.addr %s312, 4
        %s316 = sadd.s32 %s314, %s315
        %s317 = smul.addr %s316, 8
        %s318 = scalar_lea.vmem %s4, %s317
      $region48: #{downsampling_forward.3} parent=43 // pred_fallthru
        _
    $region44: #{downsampling_forward.3} parent=5 // pred_fallthru
      _
  $region6: #{downsampling_forward.3} parent=0 // loop_footer
    %s16 = sadd.s32 1, %s12
  $region7: #{downsampling_forward.3} parent=0 // loop_footer_branch
    %11 = sbr.rel target = $region3
  $region8: #{downsampling_forward.3} parent=0 // loop_exit
    _

</llo_original>
